<compile_context>
chip_gen: v6e
topology: v6e:2x2x1
jax: 0.10.0
libtpu: 0.0.40
codegen_flags: <defaults>
</compile_context>

<pallas_src>
import jax
import jax.numpy as jnp
from jax.experimental import pallas as pl
from jax.experimental.pallas import tpu as pltpu


def _linreg_kernel(w_ref, b_ref, x_ref, o_ref):
    # w_ref, b_ref: (1,) float32 scalars in SMEM; x_ref/o_ref: VMEM tiles.
    w = w_ref[0]
    b = b_ref[0]
    o_ref[...] = (w * x_ref[...] + b).astype(o_ref.dtype)


def _round_up(a: int, m: int) -> int:
    return ((a + m - 1) // m) * m


def _round_down(a: int, m: int) -> int:
    return (a // m) * m


def _vmem_capacity_bytes() -> int:
    try:
        return int(pltpu.get_tpu_info().vmem_capacity_bytes)
    except Exception:
        return 128 << 20  # v5e/v6e default if the query is unavailable


def _tile_plan(rows: int, cols: int, in_itemsize: int, out_itemsize: int):
    """Pick (tile_rows, tile_cols, vmem_limit_bytes) for HBM-streaming affine."""
    sub = max(8, 32 // in_itemsize)          # packed sublane multiple: 8 f32 / 16 bf16 / 32 int8
    vmem_cap = _vmem_capacity_bytes()
    v7x_class = vmem_cap <= (64 << 20)       # v7x: 64 MiB VMEM per TensorCore
    target_in_block = (6 << 20) if v7x_class else (8 << 20)

    # Columns: keep the full (lane-aligned) width when it fits the block budget
    # at the minimum row count; otherwise a large multiple of 128.
    max_tc = max(128, _round_down(target_in_block // (sub * in_itemsize), 128))
    tc = cols if cols <= max_tc else max_tc

    # Rows: as many as fit the byte target, aligned to the packed sublane
    # multiple; never larger than the array (partial edge blocks are masked).
    if rows <= sub:
        tr = rows                            # block == full row extent (allowed by tiling rule)
    else:
        tr = max(sub, _round_down(min(target_in_block // (tc * in_itemsize), rows), sub))
        # Megacore: keep >= 2 grid steps so both v7x TensorCores get work.
        if pl.cdiv(rows, tr) * pl.cdiv(cols, tc) < 2:
            tr = _round_up(pl.cdiv(rows, 2), sub)

    # Double-buffered in+out footprint for this block choice (+ headroom).
    footprint = 2 * tr * tc * (in_itemsize + out_itemsize)
    cap = (48 << 20) if v7x_class else (100 << 20)
    vmem_limit = int(min(cap, max(32 << 20, footprint + (8 << 20))))
    return tr, tc, vmem_limit


def _run_affine_2d(x2d: jax.Array, weights: jax.Array, bias: jax.Array,
                   out_dtype) -> jax.Array:
    rows, cols = x2d.shape
    in_itemsize = jnp.dtype(x2d.dtype).itemsize
    out_itemsize = jnp.dtype(out_dtype).itemsize
    tr, tc, vmem_limit = _tile_plan(rows, cols, in_itemsize, out_itemsize)
    grid = (pl.cdiv(rows, tr), pl.cdiv(cols, tc))

    cost = pl.CostEstimate(
        flops=2 * rows * cols,
        transcendentals=0,
        bytes_accessed=rows * cols * (in_itemsize + out_itemsize) + 8,
    )

    return pl.pallas_call(
        _linreg_kernel,
        out_shape=jax.ShapeDtypeStruct((rows, cols), out_dtype),
        grid_spec=pltpu.PrefetchScalarGridSpec(
            num_scalar_prefetch=0,
            grid=grid,
            in_specs=[
                pl.BlockSpec(memory_space=pltpu.SMEM),            # weights (1,) f32
                pl.BlockSpec(memory_space=pltpu.SMEM),            # bias    (1,) f32
                pl.BlockSpec((tr, tc), lambda i, j: (i, j)),      # x tile
            ],
            out_specs=pl.BlockSpec((tr, tc), lambda i, j: (i, j)),
        ),
        compiler_params=pltpu.CompilerParams(
            dimension_semantics=("parallel", "parallel"),
            vmem_limit_bytes=vmem_limit,
        ),
        cost_estimate=cost,
    )(weights, bias, x2d)


def linear_regression_forward(x: jax.Array, weights: jax.Array, bias: jax.Array,
                              *, lane_width: int = 1024) -> jax.Array:
    """weights * x + bias (scalar broadcast over any shape, torch promotion)."""
    weights = jnp.asarray(weights, jnp.float32).reshape(1)
    bias = jnp.asarray(bias, jnp.float32).reshape(1)
    out_dtype = jnp.result_type(x.dtype, jnp.float32)

    orig_shape = x.shape
    n = int(x.size)
    if n == 0:
        return jnp.zeros(orig_shape, out_dtype)

    last = orig_shape[-1] if len(orig_shape) >= 1 else 0

    if last > 0 and last % 128 == 0:
        # Fast path: trailing dim is lane-aligned -> collapse leading dims only
        # (free reshape); no pad, no tail slice, no extra HBM passes.
        x2d = x.reshape(n // last, last)
        out2d = _run_affine_2d(x2d, weights, bias, out_dtype)
        return out2d.reshape(orig_shape)

    # Ragged path: repack into a lane-dense (rows, lane_width) slab with minimal
    # padding (< lane_width elements). Partial row blocks are masked by Pallas.
    flat = x.reshape(-1)
    rows = max(pl.cdiv(n, lane_width), 1)
    padded_n = rows * lane_width
    if padded_n != n:
        flat = jnp.pad(flat, (0, padded_n - n))
    x2d = flat.reshape(rows, lane_width)
    out2d = _run_affine_2d(x2d, weights, bias, out_dtype)
    out_flat = out2d.reshape(-1)
    if padded_n != n:
        out_flat = out_flat[:n]
    # TODO(synk): for very large ragged inputs, an in-kernel masked tail store
    # (scalar-prefetch n) would remove the remaining pad/slice HBM passes.
    return out_flat.reshape(orig_shape)


if __name__ == "__main__":
    key = jax.random.PRNGKey(0)
    k_x1, k_x2, k_x3, k_x4, k_w, k_b = jax.random.split(key, 6)

    # Deterministic "torch.rand(1)"-style params (uniform [0,1)), float32.
    weights = jax.random.uniform(k_w, (1,), dtype=jnp.float32)
    bias = jax.random.uniform(k_b, (1,), dtype=jnp.float32)

    # Small inputs exercising: lane-aligned fast path, 4-D exact-fit ragged path,
    # ragged-with-padding path, and bf16 type promotion.
    x_main = jax.random.normal(k_x1, (16, 128), dtype=jnp.float32)
    x_4d = jax.random.normal(k_x2, (2, 4, 16, 16), dtype=jnp.float32)
    x_ragged = jax.random.normal(k_x3, (7, 33), dtype=jnp.float32)
    x_bf16 = jax.random.normal(k_x4, (4, 256), dtype=jnp.bfloat16)

    ok = True
    for x in (x_main, x_4d, x_ragged, x_bf16):
        y = jax.block_until_ready(linear_regression_forward(x, weights, bias))
        y_ref = weights[0] * x + bias[0]          # jnp promotion matches torch here
        ok &= (y.shape == x.shape) and (y.dtype == y_ref.dtype)
        ok &= bool(jnp.allclose(y, y_ref, atol=1e-6, rtol=1e-6))

    assert ok
    print("KERNEL_OK")
</pallas_src>

<mosaic_0001>
module attributes {stable_mosaic.version = 11 : i64} {
  func.func @_linreg_kernel(%arg0: i32, %arg1: i32, %arg2: memref<1xf32, #tpu.memory_space<smem>>, %arg3: memref<1xf32, #tpu.memory_space<smem>>, %arg4: memref<8x128xf32, #tpu.memory_space<vmem>>, %arg5: memref<8x128xf32, #tpu.memory_space<vmem>>) attributes {dimension_semantics = [#tpu.dimension_semantics<parallel>, #tpu.dimension_semantics<parallel>], iteration_bounds = array<i64: 2, 1>, scalar_prefetch = 0 : i64, scratch_operands = 0 : i64, tpu.core_type = #tpu.core_type<tc>, window_params = [{transform_indices = @transform_0, window_bounds = array<i64: 1>}, {transform_indices = @transform_1, window_bounds = array<i64: 1>}, {transform_indices = @transform_2, window_bounds = array<i64: 8, 128>}, {transform_indices = @transform_3, window_bounds = array<i64: 8, 128>}]} {
    %c0 = arith.constant 0 : index
    %0 = memref.load %arg2[%c0] : memref<1xf32, #tpu.memory_space<smem>>
    %c0_0 = arith.constant 0 : index
    %1 = memref.load %arg3[%c0_0] : memref<1xf32, #tpu.memory_space<smem>>
    %c0_1 = arith.constant 0 : index
    %c0_2 = arith.constant 0 : index
    %2 = vector.load %arg4[%c0_1, %c0_2] : memref<8x128xf32, #tpu.memory_space<vmem>>, vector<8x128xf32>
    %3 = vector.broadcast %0 : f32 to vector<8x128xf32>
    %4 = arith.mulf %3, %2 : vector<8x128xf32>
    %5 = vector.broadcast %1 : f32 to vector<8x128xf32>
    %6 = arith.addf %4, %5 : vector<8x128xf32>
    %c0_3 = arith.constant 0 : index
    %c0_4 = arith.constant 0 : index
    %7 = vector.load %arg5[%c0_3, %c0_4] : memref<8x128xf32, #tpu.memory_space<vmem>>, vector<8x128xf32>
    tpu.vector_store %arg5[%c0_3, %c0_4], %6 {strides = array<i32>} : memref<8x128xf32, #tpu.memory_space<vmem>>, vector<8x128xf32>,
    return
  }
  func.func @transform_0(%arg0: i32, %arg1: i32) -> i32 {
    %c0_i32 = arith.constant 0 : i32
    %c0_i32_0 = arith.constant 0 : i32
    return %c0_i32 : i32
  }
  func.func @transform_1(%arg0: i32, %arg1: i32) -> i32 {
    %c0_i32 = arith.constant 0 : i32
    %c0_i32_0 = arith.constant 0 : i32
    return %c0_i32 : i32
  }
  func.func @transform_2(%arg0: i32, %arg1: i32) -> (i32, i32) {
    %c0_i32 = arith.constant 0 : i32
    return %arg0, %arg1 : i32, i32
  }
  func.func @transform_3(%arg0: i32, %arg1: i32) -> (i32, i32) {
    %c0_i32 = arith.constant 0 : i32
    return %arg0, %arg1 : i32, i32
  }
}

</mosaic_0001>

<llo_original>
// kernel: tpu_custom_call.1
$region0: #{tpu_custom_call.1}
  #allocation0 [shape = 'u32[]', space=smem, size = 0x4, offset = 0x4, fixed_abs, tag = 'smem constant byte address 0x4 - core index']
  #allocation1 [shape = 'u32[144,128]{1,0:T(1,128)}', space=vmem, size = 0x12000, scoped, tag = 'internal scratch']
  #allocation2 [shape = 'f32[1]{0:T(128)S(6)}', space=smem, size = 0x200, scoped, tag = 'scoped memory for tpu_custom_call.1']
  #allocation3 [shape = 'f32[1]{0:T(128)S(6)}', space=smem, size = 0x200, scoped, tag = 'scoped memory for tpu_custom_call.1']
  %s0 = inlined_call_operand.<no memory space> [shape: f32[1], index: 0, kind: input, shape index: {}]
  %s1 = inlined_call_operand.<no memory space> [shape: f32[1], index: 1, kind: input, shape index: {}]
  %s2 = inlined_call_operand.hbm [shape: f32[16,128], index: 2, kind: input, shape index: {}]
  %s3 = inlined_call_operand.hbm [shape: f32[16,128], index: 3, kind: output, shape index: {}]
  %s4 = sld [smem:[#allocation0]]
  $region49: #{tpu_custom_call.1} parent=0
    _
  %s6 = ssub.s32 1, %s4
  %s7 = scalar_select 0, %s6, %s4
  %8 = sst [smem:[#allocation2]] %s0
  %9 = sst [smem:[#allocation3]] %s1
  $region1: #{tpu_custom_call.1} parent=0
    #allocation4 [shape = 'u8[8192]{0}', space=vmem, size = 0x2000, scoped, tag = 'input window, operand 2']
    #allocation5 [shape = 's32[2]{0}', space=sflag, size = 0x8, scoped, tag = 'scoped memory for tpu_custom_call.1']
    #allocation6 [shape = 's32[2]{0}', space=sflag, size = 0x8, scoped, tag = 'scoped memory for tpu_custom_call.1']
    #allocation7 [shape = 'u8[8192]{0}', space=vmem, size = 0x2000, scoped, tag = 'output window, operand 0']
    %10 = vsyncpa [#allocation5], 0
    %s11 = scalar_lea.sflag [#allocation5], 1
    %12 = vsyncpa %s11, 0
    %13 = vsyncpa [#allocation6], 0
    %s14 = scalar_lea.sflag [#allocation6], 1
    %15 = vsyncpa %s14, 0
    loop: start=0, step=1, limit=4
    $region2: #{tpu_custom_call.1} parent=1 // loop_pre_header
      _
    $region3: #{tpu_custom_call.1} parent=1 // loop_header
      %s17 = sphi 0, %s21
      %p18 = scmp.ge.s32.totalorder %s17, 4
      %s24 = sphi 0, %s36
      %s25 = sphi 0, %s32
      %s26 = sphi 0, %s24
      %s27 = sphi 0, %s25
      %s28 = sphi 0, %s26
      %s29 = sphi 0, %s27
      %s37 = sphi 0, %s37
      %s39 = sphi 0, %s37
      %s40 = sphi 0, %s39
      %s54 = sphi 0, %s40
      %s58 = sphi 0, %s58
      %s60 = sphi 0, %s58
      %s61 = sphi 0, %s60
      %s75 = sphi 0, %s61
      %s83 = sphi 0, %s85
      %s86 = sphi 0, %s83
      %s87 = sphi 0, %s86
      %s103 = sphi 0, %s87
      %s111 = sphi 0, %s113
      %s114 = sphi 0, %s111
      %s115 = sphi 0, %s114
      %s131 = sphi 0, %s115
    $region4: #{tpu_custom_call.1} parent=1 // loop_header_branch
      %20 = sbr.rel (%p18) target = $region8
    $region5: #{tpu_custom_call.1} parent=1 // loop_body
      %s22 = ssub.s32 %s17, 1
      %s23 = ssub.s32 %s17, 2
      %s30 = sadd.s32 1, %s25
      %p31 = scmp.ge.s32.totalorder %s30, 1
      %s32 = scalar_select %p31, 0, %s30
      %s33 = sadd.s32 1, %s24
      %s34 = scalar_select %p31, %s33, %s24
      %p35 = scmp.ge.s32.totalorder %s34, 2
      %s36 = scalar_select %p35, 0, %s34
      %s38 = sadd.s32 %s37, 1
      %p41 = scmp.eq.s32.totalorder %s17, 1
      %p42 = scmp.ne.s32.totalorder %s37, %s39
      %p43 = scmp.eq.s32.totalorder %s17, 0
      %p44 = por %p42, %p43
      %p45 = scmp.ne.s32.totalorder %s37, %s39
      %p46 = scmp.eq.s32.totalorder %s22, 1
      %p47 = por %p45, %p46
      %p48 = scmp.ne.s32.totalorder %s39, %s40
      %p49 = scmp.eq.s32.totalorder %s22, 0
      %p50 = por %p48, %p49
      %p51 = scmp.ne.s32.totalorder %s39, %s40
      %p52 = scmp.eq.s32.totalorder %s23, 1
      %p53 = por %p51, %p52
      %p55 = scmp.ne.s32.totalorder %s40, %s54
      %p56 = scmp.eq.s32.totalorder %s23, 0
      %p57 = por %p55, %p56
      %s59 = sadd.s32 %s58, 1
      %p62 = scmp.eq.s32.totalorder %s17, 1
      %p63 = scmp.ne.s32.totalorder %s58, %s60
      %p64 = scmp.eq.s32.totalorder %s17, 0
      %p65 = por %p63, %p64
      %p66 = scmp.ne.s32.totalorder %s58, %s60
      %p67 = scmp.eq.s32.totalorder %s22, 1
      %p68 = por %p66, %p67
      %p69 = scmp.ne.s32.totalorder %s60, %s61
      %p70 = scmp.eq.s32.totalorder %s22, 0
      %p71 = por %p69, %p70
      %p72 = scmp.ne.s32.totalorder %s60, %s61
      %p73 = scmp.eq.s32.totalorder %s23, 1
      %p74 = por %p72, %p73
      %p76 = scmp.ne.s32.totalorder %s61, %s75
      %p77 = scmp.eq.s32.totalorder %s23, 0
      %p78 = por %p76, %p77
      %s79 = ssub.s32 %s24, %s36
      %s80 = ssub.s32 %s25, %s32
      %s81 = sor.u32 %s79, %s80
      %p82 = scmp.eq.s32.totalorder %s81, 0
      %s84 = sadd.s32 %s83, 1
      %s85 = scalar_select %p82, %s83, %s84
      %p88 = pneg %p82
      %p89 = scmp.eq.s32.totalorder %s17, 1
      %p90 = por %p88, %p89
      %p91 = scmp.ne.s32.totalorder %s83, %s86
      %p92 = scmp.eq.s32.totalorder %s17, 0
      %p93 = por %p91, %p92
      %p94 = scmp.ne.s32.totalorder %s83, %s86
      %p95 = scmp.eq.s32.totalorder %s22, 1
      %p96 = por %p94, %p95
      %p97 = scmp.ne.s32.totalorder %s86, %s87
      %p98 = scmp.eq.s32.totalorder %s22, 0
      %p99 = por %p97, %p98
      %p100 = scmp.ne.s32.totalorder %s86, %s87
      %p101 = scmp.eq.s32.totalorder %s23, 1
      %p102 = por %p100, %p101
      %p104 = scmp.ne.s32.totalorder %s87, %s103
      %p105 = scmp.eq.s32.totalorder %s23, 0
      %p106 = por %p104, %p105
      %s107 = ssub.s32 %s24, %s36
      %s108 = ssub.s32 %s25, %s32
      %s109 = sor.u32 %s107, %s108
      %p110 = scmp.eq.s32.totalorder %s109, 0
      %s112 = sadd.s32 %s111, 1
      %s113 = scalar_select %p110, %s111, %s112
      %p116 = pneg %p110
      %p117 = scmp.eq.s32.totalorder %s17, 1
      %p118 = por %p116, %p117
      %p119 = scmp.ne.s32.totalorder %s111, %s114
      %p120 = scmp.eq.s32.totalorder %s17, 0
      %p121 = por %p119, %p120
      %p122 = scmp.ne.s32.totalorder %s111, %s114
      %p123 = scmp.eq.s32.totalorder %s22, 1
      %p124 = por %p122, %p123
      %p125 = scmp.ne.s32.totalorder %s114, %s115
      %p126 = scmp.eq.s32.totalorder %s22, 0
      %p127 = por %p125, %p126
      %p128 = scmp.ne.s32.totalorder %s114, %s115
      %p129 = scmp.eq.s32.totalorder %s23, 1
      %p130 = por %p128, %p129
      %p132 = scmp.ne.s32.totalorder %s115, %s131
      %p133 = scmp.eq.s32.totalorder %s23, 0
      %p134 = por %p132, %p133
      %p135 = scmp.le.s32.totalorder 1, %s17
      %p136 = scmp.lt.s32.totalorder %s17, 3
      %p137 = pnand %p135, %p136
      %p138 = pneg %p137
      // Predicated region
      $region9: #{tpu_custom_call.1} parent=5 // pred_check
        _
      $region10: #{tpu_custom_call.1} parent=5 // pred_check_branch
        %140 = sbr.rel (%p137) target = $region12
      $region11: #{tpu_custom_call.1} parent=5 // pred_region
        %s141 = ssub.s32 %s17, 1
        // Predicated region
        $region13: #{tpu_custom_call.1} parent=11 // pred_check
          %p142 = pneg %p50
        $region14: #{tpu_custom_call.1} parent=11 // pred_check_branch
          %144 = sbr.rel (%p142) target = $region16
        $region15: #{tpu_custom_call.1} parent=11 // pred_region
          _
        $region16: #{tpu_custom_call.1} parent=11 // pred_fallthru
          _
        // Predicated region
        $region17: #{tpu_custom_call.1} parent=11 // pred_check
          %p145 = pneg %p71
        $region18: #{tpu_custom_call.1} parent=11 // pred_check_branch
          %147 = sbr.rel (%p145) target = $region20
        $region19: #{tpu_custom_call.1} parent=11 // pred_region
          _
        $region20: #{tpu_custom_call.1} parent=11 // pred_fallthru
          _
      $region12: #{tpu_custom_call.1} parent=5 // pred_fallthru
        _
      %p148 = scmp.lt.s32.totalorder %s17, 2
      // Predicated region
      $region21: #{tpu_custom_call.1} parent=5 // pred_check
        %p149 = pneg %p148
      $region22: #{tpu_custom_call.1} parent=5 // pred_check_branch
        %151 = sbr.rel (%p149) target = $region24
      $region23: #{tpu_custom_call.1} parent=5 // pred_region
        // Predicated region
        $region25: #{tpu_custom_call.1} parent=23 // pred_check
          %p152 = pneg %p93
        $region26: #{tpu_custom_call.1} parent=23 // pred_check_branch
          %154 = sbr.rel (%p152) target = $region28
        $region27: #{tpu_custom_call.1} parent=23 // pred_region
          %s155 = sand.u32 %s83, 1
          %s156 = scalar_lea.sflag [#allocation5], %s155
          %s157 = sand.u32 %s83, 1
          %s158 = smul.addr %s157, 8
          %s159 = scalar_lea.vmem [#allocation4], %s158
          %s161 = ssub.s32 128, 128
          %162 = vsyncadd %s156, %s161
          %s163 = sadd.s32 %s25, %s24
          %s164 = smul.addr %s163, 128
          %s165 = scalar_lea.hbm %s2, %s164
          %s167 = sshll.u32 %s159, 4
          %s168 = int_to_ptr.vmem [resolvable:$true] %s167
          %170 = dma.hbm_to_vmem [thread:$0]  %s165, 128, %s168, %s156
        $region28: #{tpu_custom_call.1} parent=23 // pred_fallthru
          _
      $region24: #{tpu_custom_call.1} parent=5 // pred_fallthru
        _
      %p171 = scmp.le.s32.totalorder 1, %s17
      %p172 = scmp.lt.s32.totalorder %s17, 3
      %p173 = pnand %p171, %p172
      %p174 = pneg %p173
      // Predicated region
      $region29: #{tpu_custom_call.1} parent=5 // pred_check
        _
      $region30: #{tpu_custom_call.1} parent=5 // pred_check_branch
        %176 = sbr.rel (%p173) target = $region32
      $region31: #{tpu_custom_call.1} parent=5 // pred_region
        %s177 = ssub.s32 %s17, 1
        %s178 = sand.u32 %s86, 1
        %s179 = scalar_lea.sflag [#allocation5], %s178
        %s180 = sand.u32 %s86, 1
        %s181 = smul.addr %s180, 8
        %s182 = scalar_lea.vmem [#allocation4], %s181
        // Predicated region
        $region33: #{tpu_custom_call.1} parent=31 // pred_check
          %p183 = pneg %p99
        $region34: #{tpu_custom_call.1} parent=31 // pred_check_branch
          %185 = sbr.rel (%p183) target = $region36
        $region35: #{tpu_custom_call.1} parent=31 // pred_region
          %186 = dma.done %s179, 128
        $region36: #{tpu_custom_call.1} parent=31 // pred_fallthru
          _
        %p187 = pneg %p50
        %p188 = pneg %p47
        %p189 = pneg %p71
        %p190 = pneg %p68
        %s191 = sand.u32 %s86, 1
        %s192 = scalar_lea.sflag [#allocation5], %s191
        %s193 = sand.u32 %s86, 1
        %s194 = smul.addr %s193, 8
        %s195 = scalar_lea.vmem [#allocation4], %s194
        %p196 = pneg %p99
        %p197 = pneg %p96
        %p198 = pneg %p127
        %p199 = pneg %p124
        %s200 = sand.u32 %s114, 1
        %s201 = scalar_lea.sflag [#allocation6], %s200
        %s202 = sand.u32 %s114, 1
        %s203 = smul.addr %s202, 8
        %s204 = scalar_lea.vmem [#allocation7], %s203
        %s205 = sld [smem:[#allocation2]]
        %s206 = sld [smem:[#allocation3]]
        %v207 = vld [vmem:[%s182] sm:$0xff]
        %v208 = vstv %s205
        %v209 = vmul.f32 %v208, %v207
        %v210 = vstv %s206
        %v211 = vadd.f32 %v209, %v210
        %212 = vst [vmem:[%s204] sm:$0xff] %v211
        %s213 = sand.u32 %s114, 1
        %s214 = scalar_lea.sflag [#allocation6], %s213
        %s215 = sand.u32 %s114, 1
        %s216 = smul.addr %s215, 8
        %s217 = scalar_lea.vmem [#allocation7], %s216
        // Predicated region
        $region37: #{tpu_custom_call.1} parent=31 // pred_check
          %p218 = pneg %p124
        $region38: #{tpu_custom_call.1} parent=31 // pred_check_branch
          %220 = sbr.rel (%p218) target = $region40
        $region39: #{tpu_custom_call.1} parent=31 // pred_region
          %s222 = ssub.s32 128, 128
          %223 = vsyncadd %s214, %s222
          %s224 = sadd.s32 %s27, %s26
          %s225 = smul.addr %s224, 128
          %s226 = scalar_lea.hbm %s3, %s225
          %s228 = sshll.u32 %s217, 4
          %s229 = int_to_ptr.vmem [resolvable:$true] %s228
          %231 = dma.vmem_to_hbm [thread:$0]  %s229, 128, %s226, %s214
        $region40: #{tpu_custom_call.1} parent=31 // pred_fallthru
          _
      $region32: #{tpu_custom_call.1} parent=5 // pred_fallthru
        _
      %p232 = scmp.le.s32.totalorder 2, %s17
      // Predicated region
      $region41: #{tpu_custom_call.1} parent=5 // pred_check
        %p233 = pneg %p232
      $region42: #{tpu_custom_call.1} parent=5 // pred_check_branch
        %235 = sbr.rel (%p233) target = $region44
      $region43: #{tpu_custom_call.1} parent=5 // pred_region
        %s236 = ssub.s32 %s17, 2
        // Predicated region
        $region45: #{tpu_custom_call.1} parent=43 // pred_check
          %p237 = pneg %p130
        $region46: #{tpu_custom_call.1} parent=43 // pred_check_branch
          %239 = sbr.rel (%p237) target = $region48
        $region47: #{tpu_custom_call.1} parent=43 // pred_region
          %s240 = sand.u32 %s115, 1
          %s241 = scalar_lea.sflag [#allocation6], %s240
          %s242 = sand.u32 %s115, 1
          %s243 = smul.addr %s242, 8
          %s244 = scalar_lea.vmem [#allocation7], %s243
          %245 = dma.done %s241, 128
        $region48: #{tpu_custom_call.1} parent=43 // pred_fallthru
          _
      $region44: #{tpu_custom_call.1} parent=5 // pred_fallthru
        _
    $region6: #{tpu_custom_call.1} parent=1 // loop_footer
      %s21 = sadd.s32 1, %s17
    $region7: #{tpu_custom_call.1} parent=1 // loop_footer_branch
      %16 = sbr.rel target = $region3
    $region8: #{tpu_custom_call.1} parent=1 // loop_exit
      _
    %246 = vsyncpa [#allocation5], 1
    %s247 = scalar_lea.sflag [#allocation5], 1
    %248 = vsyncpa %s247, 1
    %249 = vsyncpa [#allocation6], 1
    %s250 = scalar_lea.sflag [#allocation6], 1
    %251 = vsyncpa %s250, 1

</llo_original>
